<compile_context>
chip_gen: v5e
topology: v5e:2x2
jax: 0.10.0
libtpu: 0.0.40
codegen_flags: <defaults>
</compile_context>

<pallas_src>
import jax
import jax.numpy as jnp
from jax.experimental import pallas as pl
from jax.experimental.pallas import tpu as pltpu

_LANE = 128       # vreg lane width
_SUBLANE = 8      # f32 sublane count
_ROW_TILE = 2048  # rows per block for the tiled (large-input) path


def _triple_kernel(x_ref, o_ref):
    x = x_ref[...]
    # forward semantics: result = foo + foo; result = result + foo  ==  3 * foo
    o_ref[...] = x * jnp.asarray(3, dtype=x.dtype)


def module6_forward(foo: jax.Array) -> jax.Array:
    """Pallas TPU implementation of Module6.forward (elementwise 3*x)."""
    orig_shape = foo.shape
    dtype = foo.dtype
    total = foo.size
    itemsize = jnp.dtype(dtype).itemsize

    # --- lane-dense slab layout -------------------------------------------
    # Pad the flattened element count so the kernel always works on a
    # (rows, 128) slab with rows % 8 == 0: unmasked lanes AND sublanes.
    rows_small = pl.cdiv(total, _SUBLANE * _LANE) * _SUBLANE
    use_grid = rows_small > _ROW_TILE
    if use_grid:
        # Pad rows to a multiple of the row tile so every grid step is a full
        # (ROW_TILE, 128) block — no partial blocks anywhere.
        rows = pl.cdiv(rows_small, _ROW_TILE) * _ROW_TILE
    else:
        rows = rows_small
    padded_total = rows * _LANE

    flat = foo.reshape(-1)
    if padded_total != total:
        flat = jnp.pad(flat, (0, padded_total - total))
    slab = flat.reshape(rows, _LANE)

    cost = pl.CostEstimate(
        flops=padded_total,
        transcendentals=0,
        bytes_accessed=2 * padded_total * itemsize,
    )

    if use_grid:
        out = pl.pallas_call(
            _triple_kernel,
            out_shape=jax.ShapeDtypeStruct(slab.shape, dtype),
            grid=(rows // _ROW_TILE,),
            in_specs=[pl.BlockSpec((_ROW_TILE, _LANE), lambda i: (i, 0))],
            out_specs=pl.BlockSpec((_ROW_TILE, _LANE), lambda i: (i, 0)),
            input_output_aliases={0: 0},
            cost_estimate=cost,
            compiler_params=pltpu.CompilerParams(
                dimension_semantics=("parallel",)),
        )(slab)
    else:
        # Whole-array VMEM block: one DMA in, ~2 vregs of VALU work, one DMA out.
        out = pl.pallas_call(
            _triple_kernel,
            out_shape=jax.ShapeDtypeStruct(slab.shape, dtype),
            in_specs=[pl.BlockSpec(memory_space=pltpu.MemorySpace.VMEM)],
            out_specs=pl.BlockSpec(memory_space=pltpu.MemorySpace.VMEM),
            input_output_aliases={0: 0},
            cost_estimate=cost,
        )(slab)

    return out.reshape(-1)[:total].reshape(orig_shape)


if __name__ == "__main__":
    key = jax.random.PRNGKey(0)
    # Small NCHW activation tensor consistent with the module's usage.
    x = jax.random.normal(key, (2, 4, 16, 16), dtype=jnp.float32)

    fwd = jax.jit(module6_forward)
    y = jax.block_until_ready(fwd(x))

    # Reference check against plain JAX (forward semantics of CustomFunc3).
    ref = (x + x) + x
    assert y.shape == x.shape and y.dtype == x.dtype
    assert jnp.allclose(y, ref, rtol=1e-6, atol=1e-6)

    # Also exercise a non-128-divisible shape to verify the padded lane-dense
    # fallback path stays correct.
    x2 = jax.random.normal(key, (3, 5, 7), dtype=jnp.float32)
    y2 = jax.block_until_ready(jax.jit(module6_forward)(x2))
    assert jnp.allclose(y2, (x2 + x2) + x2, rtol=1e-6, atol=1e-6)

    print("KERNEL_OK")
</pallas_src>

<mosaic_0001>
module attributes {stable_mosaic.version = 11 : i64} {
  func.func @_triple_kernel(%arg0: memref<16x128xf32, #tpu.memory_space<vmem>>, %arg1: memref<16x128xf32, #tpu.memory_space<vmem>>) attributes {dimension_semantics = [], scalar_prefetch = 0 : i64, scratch_operands = 0 : i64, tpu.core_type = #tpu.core_type<tc>} {
    %c0 = arith.constant 0 : index
    %c0_0 = arith.constant 0 : index
    %0 = vector.load %arg0[%c0, %c0_0] : memref<16x128xf32, #tpu.memory_space<vmem>>, vector<16x128xf32>
    %cst = arith.constant 3.000000e+00 : f32
    %1 = vector.broadcast %cst : f32 to vector<16x128xf32>
    %2 = arith.mulf %0, %1 : vector<16x128xf32>
    %c0_1 = arith.constant 0 : index
    %c0_2 = arith.constant 0 : index
    %3 = vector.load %arg1[%c0_1, %c0_2] : memref<16x128xf32, #tpu.memory_space<vmem>>, vector<16x128xf32>
    tpu.vector_store %arg1[%c0_1, %c0_2], %2 {strides = array<i32>} : memref<16x128xf32, #tpu.memory_space<vmem>>, vector<16x128xf32>,
    return
  }
}

</mosaic_0001>

<llo_original>
// kernel: module6_forward.1
$region0: #{module6_forward.1}
  #allocation0 [shape = 'u32[]', space=smem, size = 0x4, offset = 0x4, fixed_abs, tag = 'smem constant byte address 0x4 - core index']
  #allocation1 [shape = 'u32[72,128]{1,0:T(1,128)}', space=vmem, size = 0x9000, scoped, tag = 'internal scratch']
  %s0 = inlined_call_operand.vmem [shape: f32[16,128], index: 0, kind: input, shape index: {}, may-alias: {0,1}]
  %s1 = inlined_call_operand.vmem [shape: f32[16,128], index: 1, kind: output, shape index: {}, may-alias: {0,1}]
  %s2 = sld [smem:[#allocation0]]
  $region14: #{module6_forward.1} parent=0
    _
  %s4 = ssub.s32 1, %s2
  %s5 = scalar_select 0, %s4, %s2
  // Predicated region
  $region2: #{module6_forward.1} parent=0 // pred_check
    _
  $region3: #{module6_forward.1} parent=0 // pred_check_branch
    %7 = sbr.rel (0) target = $region5
  $region4: #{module6_forward.1} parent=0 // pred_region
    _
  $region5: #{module6_forward.1} parent=0 // pred_fallthru
    _
  %v8 = vld [vmem:[%s0] sm:$0xff]
  %v9 = vld [vmem:[%s0 + $0x8] sm:$0xff]
  %v10 = vmul.f32 %v8, 3.0
  %v11 = vmul.f32 %v9, 3.0
  %12 = vst [vmem:[%s1] sm:$0xff] %v10
  %13 = vst [vmem:[%s1 + $0x8] sm:$0xff] %v11
  // Predicated region
  $region6: #{module6_forward.1} parent=0 // pred_check
    _
  $region7: #{module6_forward.1} parent=0 // pred_check_branch
    %15 = sbr.rel (0) target = $region9
  $region8: #{module6_forward.1} parent=0 // pred_region
    _
  $region9: #{module6_forward.1} parent=0 // pred_fallthru
    _
  // Predicated region
  $region10: #{module6_forward.1} parent=0 // pred_check
    _
  $region11: #{module6_forward.1} parent=0 // pred_check_branch
    %17 = sbr.rel (0) target = $region13
  $region12: #{module6_forward.1} parent=0 // pred_region
    _
  $region13: #{module6_forward.1} parent=0 // pred_fallthru
    _

</llo_original>
